<compile_context>
chip_gen: v7x
topology: tpu7x:2x2x1
jax: 0.10.0
libtpu: 0.0.40
codegen_flags: <defaults>
</compile_context>

<pallas_src>
import jax
import jax.numpy as jnp
from jax import lax
from jax.experimental import pallas as pl
from jax.experimental.pallas import tpu as pltpu


def _make_residual_kernel(C, Cmid, Cout, H, W, PAD):
    HW = H * W

    def kernel(x_ref, w3_ref, w1_ref, mask_ref, out_ref, pad_ref):
        # x_ref   : (1, C, HW)       one image, channels x flattened pixels
        # w3_ref  : (3, Cmid, 3*C)   3x3 weights grouped by dy; cols (dx, cin)
        # w1_ref  : (Cout, Cmid)     1x1 conv weights
        # mask_ref: (2, HW)          row 0 = ok_left (col>=1), row 1 = ok_right (col<=W-2)
        # out_ref : (1, Cout, HW)
        # pad_ref : (C, 2*PAD+HW)    VMEM scratch: zero-haloed flat ReLU(x)

        # Zero ONLY the halo strips (center is fully overwritten right after).
        # Done every step: scratch is per-core and uninitialized on its first
        # step under the "parallel" batch axis.
        pad_ref[:, :PAD] = jnp.zeros((C, PAD), dtype=pad_ref.dtype)
        pad_ref[:, PAD + HW:] = jnp.zeros((C, PAD), dtype=pad_ref.dtype)
        # Lane-aligned, unmasked center store of ReLU(x).
        pad_ref[:, PAD:PAD + HW] = jnp.maximum(x_ref[0], 0.0)

        # Broadcast the column-edge masks to (C, HW) exactly once.
        ml = jnp.broadcast_to(mask_ref[0:1, :], (C, HW))   # valid when col >= 1
        mr = jnp.broadcast_to(mask_ref[1:2, :], (C, HW))   # valid when col <= W-2

        # 3x3 conv as three dy-group matmuls with K = 3*C, f32 accumulation.
        h = None
        for dy in range(3):
            taps = []
            for dx in range(3):
                s = (dy - 1) * W + (dx - 1)           # flat pixel shift of this tap
                t = pad_ref[:, PAD + s:PAD + s + HW]  # (C, HW)
                if dx == 0:
                    t = t * ml                        # reading column x-1
                elif dx == 2:
                    t = t * mr                        # reading column x+1
                taps.append(t)
            pg = jnp.concatenate(taps, axis=0)        # (3*C, HW), 8-row-aligned pieces
            wg = w3_ref[dy]                           # (Cmid, 3*C)
            d = jnp.dot(wg, pg.astype(wg.dtype),
                        preferred_element_type=jnp.float32)
            h = d if h is None else h + d             # (Cmid, HW) f32
        h = jnp.maximum(h, 0.0)                       # ReLU

        w1 = w1_ref[...]
        y = jnp.dot(w1, h.astype(w1.dtype),
                    preferred_element_type=jnp.float32)   # (Cout, HW)

        # Residual add: re-read x_ref (resident in VMEM) instead of keeping it
        # live across the matmuls; lane-dense output store.
        out_ref[0] = (x_ref[0] + y).astype(out_ref.dtype)

    return kernel


def residual_forward(x_nchw, w3_hwio, w1):
    """x_nchw: (N, C, H, W) f32; w3_hwio: (3,3,Cin,Cmid); w1: (Cmid, Cout)."""
    N, C, H, W = x_nchw.shape
    Cmid = w3_hwio.shape[3]
    Cout = w1.shape[1]
    assert Cout == C, "residual add requires num_hiddens == in_channels"
    HW = H * W
    # Layout preconditions for lane-dense stores / aligned sublane concat.
    assert HW % 128 == 0, "H*W must be a multiple of 128 (pad spatially upstream)"
    assert C % 8 == 0, "in_channels must be a multiple of 8"

    # Zero halo on the flattened pixel axis: >= W+1 each side, rounded to 128
    # so the center store stays lane-aligned.
    PAD = ((W + 1 + 127) // 128) * 128

    # Contiguous reshape only (no transpose, no HBM pad pass).
    x_flat = x_nchw.reshape(N, C, HW)
    # One-time weight prep (tiny): (3,3,Cin,Cmid) -> (3, Cmid, 3*Cin), columns
    # ordered (dx, cin) inside each dy group; (Cmid, Cout) -> (Cout, Cmid).
    # Pass these as bf16 to hit the native bf16 MXU path (accuracy knob).
    w3_grp = jnp.transpose(w3_hwio, (0, 3, 1, 2)).reshape(3, Cmid, 3 * C)
    w1_mat = w1.T

    # Column-edge masks precomputed once on host side of the kernel.
    col = jnp.arange(HW, dtype=jnp.int32) % W
    masks = jnp.stack([col >= 1, col <= W - 2], axis=0).astype(jnp.float32)

    kernel = _make_residual_kernel(C, Cmid, Cout, H, W, PAD)

    # Explicit VMEM budget from the working set (double-buffered blocks +
    # resident weights/masks + scratch + patch slab + intermediates), with 2x
    # headroom for temporaries, floored at 32 MiB.
    est = 4 * (2 * C * HW + 2 * Cout * HW            # x / out blocks (x2 buffers)
               + 2 * 3 * Cmid * 3 * C + 2 * Cout * Cmid + 2 * 2 * HW  # weights, masks
               + C * (2 * PAD + HW)                  # halo scratch
               + 3 * C * HW                          # one dy-group patch slab
               + Cmid * HW + Cout * HW)              # h, y
    vmem_limit = int(min(max(2 * est, 32 * 1024 * 1024), 128 * 1024 * 1024))

    out_flat = pl.pallas_call(
        kernel,
        out_shape=jax.ShapeDtypeStruct((N, Cout, HW), jnp.float32),
        grid_spec=pltpu.PrefetchScalarGridSpec(
            num_scalar_prefetch=0,
            grid=(N,),
            in_specs=[
                pl.BlockSpec((1, C, HW), lambda n: (n, 0, 0)),
                pl.BlockSpec((3, Cmid, 3 * C), lambda n: (0, 0, 0)),  # resident
                pl.BlockSpec((Cout, Cmid), lambda n: (0, 0)),         # resident
                pl.BlockSpec((2, HW), lambda n: (0, 0)),              # resident
            ],
            out_specs=pl.BlockSpec((1, Cout, HW), lambda n: (n, 0, 0)),
            scratch_shapes=[pltpu.VMEM((C, 2 * PAD + HW), jnp.float32)],
        ),
        compiler_params=pltpu.CompilerParams(
            dimension_semantics=("parallel",),   # batch axis -> both TCs on v7x
            vmem_limit_bytes=vmem_limit),
    )(x_flat, w3_grp, w1_mat, masks)

    return out_flat.reshape(N, Cout, H, W)


def residual_reference(x_nchw, w3_hwio, w1):
    """Pure-JAX reference (matches PyTorch semantics)."""
    x_nhwc = jnp.transpose(x_nchw, (0, 2, 3, 1))
    h = jnp.maximum(x_nhwc, 0.0)
    h = lax.conv_general_dilated(
        h, w3_hwio, window_strides=(1, 1), padding="SAME",
        dimension_numbers=("NHWC", "HWIO", "NHWC"))
    h = jnp.maximum(h, 0.0)
    w1_hwio = w1[None, None, :, :]  # (1,1,Cmid,Cout)
    h = lax.conv_general_dilated(
        h, w1_hwio, window_strides=(1, 1), padding="VALID",
        dimension_numbers=("NHWC", "HWIO", "NHWC"))
    out = x_nhwc + h
    return jnp.transpose(out, (0, 3, 1, 2))


if __name__ == "__main__":
    # Small, deterministic configuration (H*W = 256 -> lane-dense blocks).
    N, H, W = 2, 16, 16
    in_channels = 8          # == num_hiddens (required by the residual add)
    num_hiddens = 8
    num_residual_hiddens = 16

    key = jax.random.PRNGKey(0)
    kx, kw3, kw1 = jax.random.split(key, 3)

    x = jax.random.normal(kx, (N, in_channels, H, W), dtype=jnp.float32)
    # Conv3x3 weight, HWIO layout: (3, 3, Cin, Cmid)
    w3 = 0.1 * jax.random.normal(
        kw3, (3, 3, in_channels, num_residual_hiddens), dtype=jnp.float32)
    # Conv1x1 weight: (Cmid, Cout)
    w1 = 0.1 * jax.random.normal(
        kw1, (num_residual_hiddens, num_hiddens), dtype=jnp.float32)

    out = residual_forward(x, w3, w1)
    jax.block_until_ready(out)

    ref = residual_reference(x, w3, w1)
    assert out.shape == (N, num_hiddens, H, W)
    assert jnp.allclose(out, ref, atol=1e-4, rtol=1e-4), "mismatch vs reference"

    print("KERNEL_OK")
</pallas_src>

<mosaic_0001>
module attributes {stable_mosaic.version = 11 : i64} {
  func.func @kernel(%arg0: i32, %arg1: memref<1x8x256xf32, #tpu.memory_space<vmem>>, %arg2: memref<3x16x24xf32, #tpu.memory_space<vmem>>, %arg3: memref<8x16xf32, #tpu.memory_space<vmem>>, %arg4: memref<2x256xf32, #tpu.memory_space<vmem>>, %arg5: memref<1x8x256xf32, #tpu.memory_space<vmem>>, %arg6: memref<8x512xf32, #tpu.memory_space<vmem>>) attributes {dimension_semantics = [#tpu.dimension_semantics<parallel>], iteration_bounds = array<i64: 2>, scalar_prefetch = 0 : i64, scratch_operands = 1 : i64, tpu.core_type = #tpu.core_type<tc>, window_params = [{transform_indices = @transform_0, window_bounds = array<i64: 1, 8, 256>}, {pipeline_mode = #tpu.pipeline_mode<synchronous>, transform_indices = @transform_1, window_bounds = array<i64: 3, 16, 24>}, {pipeline_mode = #tpu.pipeline_mode<synchronous>, transform_indices = @transform_2, window_bounds = array<i64: 8, 16>}, {pipeline_mode = #tpu.pipeline_mode<synchronous>, transform_indices = @transform_3, window_bounds = array<i64: 2, 256>}, {transform_indices = @transform_4, window_bounds = array<i64: 1, 8, 256>}]} {
    %cst = arith.constant 0.000000e+00 : f32
    %0 = vector.broadcast %cst : f32 to vector<8x128xf32>
    %c0 = arith.constant 0 : index
    %c0_0 = arith.constant 0 : index
    %1 = vector.load %arg6[%c0, %c0_0] : memref<8x512xf32, #tpu.memory_space<vmem>>, vector<8x128xf32>
    tpu.vector_store %arg6[%c0, %c0_0], %0 {strides = array<i32>} : memref<8x512xf32, #tpu.memory_space<vmem>>, vector<8x128xf32>,
    %cst_1 = arith.constant 0.000000e+00 : f32
    %2 = vector.broadcast %cst_1 : f32 to vector<8x128xf32>
    %c0_2 = arith.constant 0 : index
    %c384 = arith.constant 384 : index
    %3 = vector.load %arg6[%c0_2, %c384] : memref<8x512xf32, #tpu.memory_space<vmem>>, vector<8x128xf32>
    tpu.vector_store %arg6[%c0_2, %c384], %2 {strides = array<i32>} : memref<8x512xf32, #tpu.memory_space<vmem>>, vector<8x128xf32>,
    %c0_3 = arith.constant 0 : index
    %c0_4 = arith.constant 0 : index
    %c0_5 = arith.constant 0 : index
    %4 = vector.load %arg1[%c0_3, %c0_4, %c0_5] : memref<1x8x256xf32, #tpu.memory_space<vmem>>, vector<1x8x256xf32>
    %5 = vector.shape_cast %4 : vector<1x8x256xf32> to vector<8x256xf32>
    %cst_6 = arith.constant 0.000000e+00 : f32
    %6 = vector.broadcast %cst_6 : f32 to vector<8x256xf32>
    %7 = arith.maximumf %5, %6 : vector<8x256xf32>
    %c0_7 = arith.constant 0 : index
    %c128 = arith.constant 128 : index
    %8 = vector.load %arg6[%c0_7, %c128] : memref<8x512xf32, #tpu.memory_space<vmem>>, vector<8x256xf32>
    tpu.vector_store %arg6[%c0_7, %c128], %7 {strides = array<i32>} : memref<8x512xf32, #tpu.memory_space<vmem>>, vector<8x256xf32>,
    %c0_8 = arith.constant 0 : index
    %c0_9 = arith.constant 0 : index
    %9 = vector.load %arg4[%c0_8, %c0_9] : memref<2x256xf32, #tpu.memory_space<vmem>>, vector<1x256xf32>
    %10 = vector.shape_cast %9 : vector<1x256xf32> to vector<1x256xf32>
    %11 = vector.broadcast %10 : vector<1x256xf32> to vector<8x256xf32>
    %c1 = arith.constant 1 : index
    %c0_10 = arith.constant 0 : index
    %12 = vector.load %arg4[%c1, %c0_10] : memref<2x256xf32, #tpu.memory_space<vmem>>, vector<1x256xf32>
    %13 = vector.shape_cast %12 : vector<1x256xf32> to vector<1x256xf32>
    %14 = vector.broadcast %13 : vector<1x256xf32> to vector<8x256xf32>
    %c0_11 = arith.constant 0 : index
    %c111 = arith.constant 111 : index
    %15 = vector.load %arg6[%c0_11, %c111] : memref<8x512xf32, #tpu.memory_space<vmem>>, vector<8x256xf32>
    %16 = arith.mulf %15, %11 : vector<8x256xf32>
    %c0_12 = arith.constant 0 : index
    %c112 = arith.constant 112 : index
    %17 = vector.load %arg6[%c0_12, %c112] : memref<8x512xf32, #tpu.memory_space<vmem>>, vector<8x256xf32>
    %c0_13 = arith.constant 0 : index
    %c113 = arith.constant 113 : index
    %18 = vector.load %arg6[%c0_13, %c113] : memref<8x512xf32, #tpu.memory_space<vmem>>, vector<8x256xf32>
    %19 = arith.mulf %18, %14 : vector<8x256xf32>
    %20 = tpu.concatenate %16, %17, %19 in 0 : vector<8x256xf32>, vector<8x256xf32>, vector<8x256xf32> -> vector<24x256xf32>
    %c0_14 = arith.constant 0 : index
    %c0_15 = arith.constant 0 : index
    %c0_16 = arith.constant 0 : index
    %21 = vector.load %arg2[%c0_14, %c0_15, %c0_16] : memref<3x16x24xf32, #tpu.memory_space<vmem>>, vector<1x16x24xf32>
    %22 = vector.shape_cast %21 : vector<1x16x24xf32> to vector<16x24xf32>
    %cst_17 = arith.constant dense<0.000000e+00> : vector<16x256xf32>
    %23 = tpu.matmul %22, %20, %cst_17 {dimension_numbers = #tpu.dot_dimension_numbers<[1], [0], [0], [1], [0, 0, 1, 1], [], []>} : vector<16x24xf32>, vector<24x256xf32>, vector<16x256xf32> -> vector<16x256xf32>
    %c0_18 = arith.constant 0 : index
    %c127 = arith.constant 127 : index
    %24 = vector.load %arg6[%c0_18, %c127] : memref<8x512xf32, #tpu.memory_space<vmem>>, vector<8x256xf32>
    %25 = arith.mulf %24, %11 : vector<8x256xf32>
    %c0_19 = arith.constant 0 : index
    %c128_20 = arith.constant 128 : index
    %26 = vector.load %arg6[%c0_19, %c128_20] : memref<8x512xf32, #tpu.memory_space<vmem>>, vector<8x256xf32>
    %c0_21 = arith.constant 0 : index
    %c129 = arith.constant 129 : index
    %27 = vector.load %arg6[%c0_21, %c129] : memref<8x512xf32, #tpu.memory_space<vmem>>, vector<8x256xf32>
    %28 = arith.mulf %27, %14 : vector<8x256xf32>
    %29 = tpu.concatenate %25, %26, %28 in 0 : vector<8x256xf32>, vector<8x256xf32>, vector<8x256xf32> -> vector<24x256xf32>
    %c1_22 = arith.constant 1 : index
    %c0_23 = arith.constant 0 : index
    %c0_24 = arith.constant 0 : index
    %30 = vector.load %arg2[%c1_22, %c0_23, %c0_24] : memref<3x16x24xf32, #tpu.memory_space<vmem>>, vector<1x16x24xf32>
    %31 = vector.shape_cast %30 : vector<1x16x24xf32> to vector<16x24xf32>
    %cst_25 = arith.constant dense<0.000000e+00> : vector<16x256xf32>
    %32 = tpu.matmul %31, %29, %cst_25 {dimension_numbers = #tpu.dot_dimension_numbers<[1], [0], [0], [1], [0, 0, 1, 1], [], []>} : vector<16x24xf32>, vector<24x256xf32>, vector<16x256xf32> -> vector<16x256xf32>
    %33 = arith.addf %23, %32 : vector<16x256xf32>
    %c0_26 = arith.constant 0 : index
    %c143 = arith.constant 143 : index
    %34 = vector.load %arg6[%c0_26, %c143] : memref<8x512xf32, #tpu.memory_space<vmem>>, vector<8x256xf32>
    %35 = arith.mulf %34, %11 : vector<8x256xf32>
    %c0_27 = arith.constant 0 : index
    %c144 = arith.constant 144 : index
    %36 = vector.load %arg6[%c0_27, %c144] : memref<8x512xf32, #tpu.memory_space<vmem>>, vector<8x256xf32>
    %c0_28 = arith.constant 0 : index
    %c145 = arith.constant 145 : index
    %37 = vector.load %arg6[%c0_28, %c145] : memref<8x512xf32, #tpu.memory_space<vmem>>, vector<8x256xf32>
    %38 = arith.mulf %37, %14 : vector<8x256xf32>
    %39 = tpu.concatenate %35, %36, %38 in 0 : vector<8x256xf32>, vector<8x256xf32>, vector<8x256xf32> -> vector<24x256xf32>
    %c2 = arith.constant 2 : index
    %c0_29 = arith.constant 0 : index
    %c0_30 = arith.constant 0 : index
    %40 = vector.load %arg2[%c2, %c0_29, %c0_30] : memref<3x16x24xf32, #tpu.memory_space<vmem>>, vector<1x16x24xf32>
    %41 = vector.shape_cast %40 : vector<1x16x24xf32> to vector<16x24xf32>
    %cst_31 = arith.constant dense<0.000000e+00> : vector<16x256xf32>
    %42 = tpu.matmul %41, %39, %cst_31 {dimension_numbers = #tpu.dot_dimension_numbers<[1], [0], [0], [1], [0, 0, 1, 1], [], []>} : vector<16x24xf32>, vector<24x256xf32>, vector<16x256xf32> -> vector<16x256xf32>
    %43 = arith.addf %33, %42 : vector<16x256xf32>
    %cst_32 = arith.constant 0.000000e+00 : f32
    %44 = vector.broadcast %cst_32 : f32 to vector<16x256xf32>
    %45 = arith.maximumf %43, %44 : vector<16x256xf32>
    %c0_33 = arith.constant 0 : index
    %c0_34 = arith.constant 0 : index
    %46 = vector.load %arg3[%c0_33, %c0_34] : memref<8x16xf32, #tpu.memory_space<vmem>>, vector<8x16xf32>
    %cst_35 = arith.constant dense<0.000000e+00> : vector<8x256xf32>
    %47 = tpu.matmul %46, %45, %cst_35 {dimension_numbers = #tpu.dot_dimension_numbers<[1], [0], [0], [1], [0, 0, 1, 1], [], []>} : vector<8x16xf32>, vector<16x256xf32>, vector<8x256xf32> -> vector<8x256xf32>
    %c0_36 = arith.constant 0 : index
    %c0_37 = arith.constant 0 : index
    %c0_38 = arith.constant 0 : index
    %48 = vector.load %arg1[%c0_36, %c0_37, %c0_38] : memref<1x8x256xf32, #tpu.memory_space<vmem>>, vector<1x8x256xf32>
    %49 = vector.shape_cast %48 : vector<1x8x256xf32> to vector<8x256xf32>
    %50 = arith.addf %49, %47 : vector<8x256xf32>
    %c0_39 = arith.constant 0 : index
    %c0_40 = arith.constant 0 : index
    %c0_41 = arith.constant 0 : index
    %51 = vector.load %arg5[%c0_39, %c0_40, %c0_41] : memref<1x8x256xf32, #tpu.memory_space<vmem>>, vector<1x8x256xf32>
    %52 = vector.shape_cast %51 : vector<1x8x256xf32> to vector<8x256xf32>
    %53 = vector.shape_cast %50 : vector<8x256xf32> to vector<1x8x256xf32>
    tpu.vector_store %arg5[%c0_39, %c0_40, %c0_41], %53 {strides = array<i32>} : memref<1x8x256xf32, #tpu.memory_space<vmem>>, vector<1x8x256xf32>,
    return
  }
  func.func @transform_0(%arg0: i32) -> (i32, i32, i32) {
    %c0_i32 = arith.constant 0 : i32
    %c0_i32_0 = arith.constant 0 : i32
    %c0_i32_1 = arith.constant 0 : i32
    return %arg0, %c0_i32, %c0_i32_0 : i32, i32, i32
  }
  func.func @transform_1(%arg0: i32) -> (i32, i32, i32) {
    %c0_i32 = arith.constant 0 : i32
    %c0_i32_0 = arith.constant 0 : i32
    %c0_i32_1 = arith.constant 0 : i32
    %c0_i32_2 = arith.constant 0 : i32
    return %c0_i32, %c0_i32_0, %c0_i32_1 : i32, i32, i32
  }
  func.func @transform_2(%arg0: i32) -> (i32, i32) {
    %c0_i32 = arith.constant 0 : i32
    %c0_i32_0 = arith.constant 0 : i32
    %c0_i32_1 = arith.constant 0 : i32
    return %c0_i32, %c0_i32_0 : i32, i32
  }
  func.func @transform_3(%arg0: i32) -> (i32, i32) {
    %c0_i32 = arith.constant 0 : i32
    %c0_i32_0 = arith.constant 0 : i32
    %c0_i32_1 = arith.constant 0 : i32
    return %c0_i32, %c0_i32_0 : i32, i32
  }
  func.func @transform_4(%arg0: i32) -> (i32, i32, i32) {
    %c0_i32 = arith.constant 0 : i32
    %c0_i32_0 = arith.constant 0 : i32
    %c0_i32_1 = arith.constant 0 : i32
    return %arg0, %c0_i32, %c0_i32_0 : i32, i32, i32
  }
}

</mosaic_0001>

<llo_original>
// kernel: tpu_custom_call.1
$region0: #{tpu_custom_call.1}
  #allocation0 [shape = 'u32[]', space=smem, size = 0x4, offset = 0x4, fixed_abs, tag = 'smem constant byte address 0x4 - core index']
  #allocation1 [shape = 'u32[144,128]{1,0:T(1,128)}', space=vmem, size = 0x12000, scoped, tag = 'internal scratch']
  #allocation2 [shape = 'f32[8,512]{1,0:T(8,128)}', space=vmem, size = 0x4000, scoped, tag = 'scratch operand']
  %s0 = inlined_call_operand.hbm [shape: f32[2,8,256], index: 0, kind: input, shape index: {}]
  %s1 = inlined_call_operand.hbm [shape: f32[3,16,24], index: 1, kind: input, shape index: {}]
  %s2 = inlined_call_operand.hbm [shape: f32[8,16], index: 2, kind: input, shape index: {}]
  %s3 = inlined_call_operand.vmem [shape: f32[2,256], index: 3, kind: input, shape index: {}]
  %s4 = inlined_call_operand.hbm [shape: f32[2,8,256], index: 4, kind: output, shape index: {}]
  %s5 = sld [smem:[#allocation0]]
  $region61: #{tpu_custom_call.1} parent=0
    _
  %s7 = ssub.s32 1, %s5
  %s8 = scalar_select 0, %s7, %s5
  $region1: #{tpu_custom_call.1} parent=0
    #allocation3 [shape = 'u8[16384]{0}', space=vmem, size = 0x4000, scoped, tag = 'input window, operand 0']
    #allocation4 [shape = 's32[2]{0}', space=sflag, size = 0x8, scoped, tag = 'scoped memory for tpu_custom_call.1']
    #allocation5 [shape = 's32[2]{0}', space=sflag, size = 0x8, scoped, tag = 'scoped memory for tpu_custom_call.1']
    #allocation6 [shape = 'u8[24576]{0}', space=vmem, size = 0x6000, scoped, tag = 'input window, operand 1, single buffered']
    #allocation7 [shape = 's32[1]{0}', space=sflag, size = 0x4, scoped, tag = 'scoped memory for tpu_custom_call.1']
    #allocation8 [shape = 'u8[4096]{0}', space=vmem, size = 0x1000, scoped, tag = 'input window, operand 2, single buffered']
    #allocation9 [shape = 'u8[16384]{0}', space=vmem, size = 0x4000, scoped, tag = 'output window, operand 0']
    %9 = vsyncpa [#allocation4], 0
    %s10 = scalar_lea.sflag [#allocation4], 1
    %11 = vsyncpa %s10, 0
    %12 = vsyncpa [#allocation7], 0
    %13 = vsyncpa [#allocation5], 0
    %s14 = scalar_lea.sflag [#allocation5], 1
    %15 = vsyncpa %s14, 0
    loop: start=0, step=1, limit=4
    $region2: #{tpu_custom_call.1} parent=1 // loop_pre_header
      _
    $region3: #{tpu_custom_call.1} parent=1 // loop_header
      %s17 = sphi 0, %s21
      %p18 = scmp.ge.s32.totalorder %s17, 4
      %s27 = sphi 0, %s29
      %s30 = sphi 0, %s27
      %s31 = sphi 0, %s30
      %s47 = sphi 0, %s31
      %s51 = sphi 0, %s51
      %s53 = sphi 0, %s51
      %s54 = sphi 0, %s53
      %s68 = sphi 0, %s54
      %s72 = sphi 0, %s72
      %s74 = sphi 0, %s72
      %s75 = sphi 0, %s74
      %s89 = sphi 0, %s75
      %s93 = sphi 0, %s93
      %s95 = sphi 0, %s93
      %s96 = sphi 0, %s95
      %s110 = sphi 0, %s96
      %s116 = sphi 0, %s118
      %s119 = sphi 0, %s116
      %s120 = sphi 0, %s119
      %s136 = sphi 0, %s120
    $region4: #{tpu_custom_call.1} parent=1 // loop_header_branch
      %20 = sbr.rel (%p18) target = $region8
    $region5: #{tpu_custom_call.1} parent=1 // loop_body
      %s22 = ssub.s32 %s17, 1
      %s23 = ssub.s32 %s17, 2
      %s24 = sadd.s32 %s17, 1
      %s25 = ssub.s32 %s17, %s24
      %p26 = scmp.eq.s32.totalorder %s25, 0
      %s28 = sadd.s32 %s27, 1
      %s29 = scalar_select %p26, %s27, %s28
      %p32 = pneg %p26
      %p33 = scmp.eq.s32.totalorder %s17, 1
      %p34 = por %p32, %p33
      %p35 = scmp.ne.s32.totalorder %s27, %s30
      %p36 = scmp.eq.s32.totalorder %s17, 0
      %p37 = por %p35, %p36
      %p38 = scmp.ne.s32.totalorder %s27, %s30
      %p39 = scmp.eq.s32.totalorder %s22, 1
      %p40 = por %p38, %p39
      %p41 = scmp.ne.s32.totalorder %s30, %s31
      %p42 = scmp.eq.s32.totalorder %s22, 0
      %p43 = por %p41, %p42
      %p44 = scmp.ne.s32.totalorder %s30, %s31
      %p45 = scmp.eq.s32.totalorder %s23, 1
      %p46 = por %p44, %p45
      %p48 = scmp.ne.s32.totalorder %s31, %s47
      %p49 = scmp.eq.s32.totalorder %s23, 0
      %p50 = por %p48, %p49
      %s52 = sadd.s32 %s51, 1
      %p55 = scmp.eq.s32.totalorder %s17, 1
      %p56 = scmp.ne.s32.totalorder %s51, %s53
      %p57 = scmp.eq.s32.totalorder %s17, 0
      %p58 = por %p56, %p57
      %p59 = scmp.ne.s32.totalorder %s51, %s53
      %p60 = scmp.eq.s32.totalorder %s22, 1
      %p61 = por %p59, %p60
      %p62 = scmp.ne.s32.totalorder %s53, %s54
      %p63 = scmp.eq.s32.totalorder %s22, 0
      %p64 = por %p62, %p63
      %p65 = scmp.ne.s32.totalorder %s53, %s54
      %p66 = scmp.eq.s32.totalorder %s23, 1
      %p67 = por %p65, %p66
      %p69 = scmp.ne.s32.totalorder %s54, %s68
      %p70 = scmp.eq.s32.totalorder %s23, 0
      %p71 = por %p69, %p70
      %s73 = sadd.s32 %s72, 1
      %p76 = scmp.eq.s32.totalorder %s17, 1
      %p77 = scmp.ne.s32.totalorder %s72, %s74
      %p78 = scmp.eq.s32.totalorder %s17, 0
      %p79 = por %p77, %p78
      %p80 = scmp.ne.s32.totalorder %s72, %s74
      %p81 = scmp.eq.s32.totalorder %s22, 1
      %p82 = por %p80, %p81
      %p83 = scmp.ne.s32.totalorder %s74, %s75
      %p84 = scmp.eq.s32.totalorder %s22, 0
      %p85 = por %p83, %p84
      %p86 = scmp.ne.s32.totalorder %s74, %s75
      %p87 = scmp.eq.s32.totalorder %s23, 1
      %p88 = por %p86, %p87
      %p90 = scmp.ne.s32.totalorder %s75, %s89
      %p91 = scmp.eq.s32.totalorder %s23, 0
      %p92 = por %p90, %p91
      %s94 = sadd.s32 %s93, 1
      %p97 = scmp.eq.s32.totalorder %s17, 1
      %p98 = scmp.ne.s32.totalorder %s93, %s95
      %p99 = scmp.eq.s32.totalorder %s17, 0
      %p100 = por %p98, %p99
      %p101 = scmp.ne.s32.totalorder %s93, %s95
      %p102 = scmp.eq.s32.totalorder %s22, 1
      %p103 = por %p101, %p102
      %p104 = scmp.ne.s32.totalorder %s95, %s96
      %p105 = scmp.eq.s32.totalorder %s22, 0
      %p106 = por %p104, %p105
      %p107 = scmp.ne.s32.totalorder %s95, %s96
      %p108 = scmp.eq.s32.totalorder %s23, 1
      %p109 = por %p107, %p108
      %p111 = scmp.ne.s32.totalorder %s96, %s110
      %p112 = scmp.eq.s32.totalorder %s23, 0
      %p113 = por %p111, %p112
      %s114 = ssub.s32 %s17, %s24
      %p115 = scmp.eq.s32.totalorder %s114, 0
      %s117 = sadd.s32 %s116, 1
      %s118 = scalar_select %p115, %s116, %s117
      %p121 = pneg %p115
      %p122 = scmp.eq.s32.totalorder %s17, 1
      %p123 = por %p121, %p122
      %p124 = scmp.ne.s32.totalorder %s116, %s119
      %p125 = scmp.eq.s32.totalorder %s17, 0
      %p126 = por %p124, %p125
      %p127 = scmp.ne.s32.totalorder %s116, %s119
      %p128 = scmp.eq.s32.totalorder %s22, 1
      %p129 = por %p127, %p128
      %p130 = scmp.ne.s32.totalorder %s119, %s120
      %p131 = scmp.eq.s32.totalorder %s22, 0
      %p132 = por %p130, %p131
      %p133 = scmp.ne.s32.totalorder %s119, %s120
      %p134 = scmp.eq.s32.totalorder %s23, 1
      %p135 = por %p133, %p134
      %p137 = scmp.ne.s32.totalorder %s120, %s136
      %p138 = scmp.eq.s32.totalorder %s23, 0
      %p139 = por %p137, %p138
      %p140 = scmp.le.s32.totalorder 1, %s17
      %p141 = scmp.lt.s32.totalorder %s17, 3
      %p142 = pnand %p140, %p141
      %p143 = pneg %p142
      // Predicated region
      $region9: #{tpu_custom_call.1} parent=5 // pred_check
        _
      $region10: #{tpu_custom_call.1} parent=5 // pred_check_branch
        %145 = sbr.rel (%p142) target = $region12
      $region11: #{tpu_custom_call.1} parent=5 // pred_region
        %s146 = ssub.s32 %s17, 1
        // Predicated region
        $region13: #{tpu_custom_call.1} parent=11 // pred_check
          %p147 = pneg %p64
        $region14: #{tpu_custom_call.1} parent=11 // pred_check_branch
          %149 = sbr.rel (%p147) target = $region16
        $region15: #{tpu_custom_call.1} parent=11 // pred_region
          %s151 = ssub.s32 768, 768
          %152 = vsyncadd [#allocation7], %s151
          %s153 = sshll.u32 [#allocation6], 4
          %s154 = int_to_ptr.vmem [resolvable:$true] %s153
          %159 = dma.hbm_to_vmem [thread:$0]  %s1, 768, %s154, [#allocation7], 128, 128, 8
        $region16: #{tpu_custom_call.1} parent=11 // pred_fallthru
          _
        // Predicated region
        $region17: #{tpu_custom_call.1} parent=11 // pred_check
          %p160 = pneg %p85
        $region18: #{tpu_custom_call.1} parent=11 // pred_check_branch
          %162 = sbr.rel (%p160) target = $region20
        $region19: #{tpu_custom_call.1} parent=11 // pred_region
          %s164 = ssub.s32 128, 128
          %165 = vsyncadd [#allocation7], %s164
          %s167 = sshll.u32 [#allocation8], 4
          %s168 = int_to_ptr.vmem [resolvable:$true] %s167
          %170 = dma.hbm_to_vmem [thread:$0]  %s2, 128, %s168, [#allocation7]
        $region20: #{tpu_custom_call.1} parent=11 // pred_fallthru
          _
        // Predicated region
        $region21: #{tpu_custom_call.1} parent=11 // pred_check
          %p171 = pneg %p106
        $region22: #{tpu_custom_call.1} parent=11 // pred_check_branch
          %173 = sbr.rel (%p171) target = $region24
        $region23: #{tpu_custom_call.1} parent=11 // pred_region
          _
        $region24: #{tpu_custom_call.1} parent=11 // pred_fallthru
          _
      $region12: #{tpu_custom_call.1} parent=5 // pred_fallthru
        _
      %p174 = scmp.lt.s32.totalorder %s17, 2
      // Predicated region
      $region25: #{tpu_custom_call.1} parent=5 // pred_check
        %p175 = pneg %p174
      $region26: #{tpu_custom_call.1} parent=5 // pred_check_branch
        %177 = sbr.rel (%p175) target = $region28
      $region27: #{tpu_custom_call.1} parent=5 // pred_region
        // Predicated region
        $region29: #{tpu_custom_call.1} parent=27 // pred_check
          %p178 = pneg %p37
        $region30: #{tpu_custom_call.1} parent=27 // pred_check_branch
          %180 = sbr.rel (%p178) target = $region32
        $region31: #{tpu_custom_call.1} parent=27 // pred_region
          %s181 = sand.u32 %s27, 1
          %s182 = scalar_lea.sflag [#allocation4], %s181
          %s183 = sand.u32 %s27, 1
          %s184 = smul.addr %s183, 16
          %s185 = scalar_lea.vmem [#allocation3], %s184
          %s187 = ssub.s32 256, 256
          %188 = vsyncadd %s182, %s187
          %s189 = smul.addr %s17, 2
          %s190 = smul.addr %s189, 128
          %s191 = scalar_lea.hbm %s0, %s190
          %s193 = sshll.u32 %s185, 4
          %s194 = int_to_ptr.vmem [resolvable:$true] %s193
          %196 = dma.hbm_to_vmem [thread:$0]  %s191, 256, %s194, %s182
        $region32: #{tpu_custom_call.1} parent=27 // pred_fallthru
          _
      $region28: #{tpu_custom_call.1} parent=5 // pred_fallthru
        _
      %p197 = scmp.le.s32.totalorder 1, %s17
      %p198 = scmp.lt.s32.totalorder %s17, 3
      %p199 = pnand %p197, %p198
      %p200 = pneg %p199
      // Predicated region
      $region33: #{tpu_custom_call.1} parent=5 // pred_check
        _
      $region34: #{tpu_custom_call.1} parent=5 // pred_check_branch
        %202 = sbr.rel (%p199) target = $region36
      $region35: #{tpu_custom_call.1} parent=5 // pred_region
        %s203 = ssub.s32 %s17, 1
        %s204 = sand.u32 %s30, 1
        %s205 = scalar_lea.sflag [#allocation4], %s204
        %s206 = sand.u32 %s30, 1
        %s207 = smul.addr %s206, 16
        %s208 = scalar_lea.vmem [#allocation3], %s207
        // Predicated region
        $region37: #{tpu_custom_call.1} parent=35 // pred_check
          %p209 = pneg %p43
        $region38: #{tpu_custom_call.1} parent=35 // pred_check_branch
          %211 = sbr.rel (%p209) target = $region40
        $region39: #{tpu_custom_call.1} parent=35 // pred_region
          %212 = dma.done %s205, 256
        $region40: #{tpu_custom_call.1} parent=35 // pred_fallthru
          _
        // Predicated region
        $region41: #{tpu_custom_call.1} parent=35 // pred_check
          %p213 = pneg %p64
        $region42: #{tpu_custom_call.1} parent=35 // pred_check_branch
          %215 = sbr.rel (%p213) target = $region44
        $region43: #{tpu_custom_call.1} parent=35 // pred_region
          %216 = dma.done [#allocation7], 768
        $region44: #{tpu_custom_call.1} parent=35 // pred_fallthru
          _
        // Predicated region
        $region45: #{tpu_custom_call.1} parent=35 // pred_check
          %p217 = pneg %p85
        $region46: #{tpu_custom_call.1} parent=35 // pred_check_branch
          %219 = sbr.rel (%p217) target = $region48
        $region47: #{tpu_custom_call.1} parent=35 // pred_region
          %220 = dma.done [#allocation7], 128
        $region48: #{tpu_custom_call.1} parent=35 // pred_fallthru
          _
        %s221 = sand.u32 %s30, 1
        %s222 = scalar_lea.sflag [#allocation4], %s221
        %s223 = sand.u32 %s30, 1
        %s224 = smul.addr %s223, 16
        %s225 = scalar_lea.vmem [#allocation3], %s224
        %p226 = pneg %p43
        %p227 = pneg %p40
        %p228 = pneg %p64
        %p229 = pneg %p61
        %p230 = pneg %p85
        %p231 = pneg %p82
        %p232 = pneg %p106
        %p233 = pneg %p103
        %p234 = pneg %p132
        %p235 = pneg %p129
        %s236 = sand.u32 %s119, 1
        %s237 = scalar_lea.sflag [#allocation5], %s236
        %s238 = sand.u32 %s119, 1
        %s239 = smul.addr %s238, 16
        %s240 = scalar_lea.vmem [#allocation9], %s239
        %241 = vst [vmem:[#allocation2] sm:$0xff] 0.0
        %242 = vst [vmem:[#allocation2 + $0x18] sm:$0xff] 0.0
        %v243 = vld [vmem:[%s208] sm:$0xff]
        %v244 = vld [vmem:[%s208 + $0x8] sm:$0xff]
        %v245 = vmax.f32 %v243, 0.0
        %v246 = vmax.f32 %v244, 0.0
        %247 = vst [vmem:[#allocation2 + $0x8] sm:$0xff] %v245
        %248 = vst [vmem:[#allocation2 + $0x10] sm:$0xff] %v246
        %v249 = vld [vmem:[%s3] ss:$2 sm:$0x3]
        %v251 = vlaneseq
        %v252 = vshrl.u32 %v251, 7
        %v253 = vsub.s32 0, %v252
        %v254 = vrot.slane %v249, %v253
        %v255 = vlaneseq
        %v256 = vshrl.u32 %v255, 7
        %v257 = vsub.s32 1, %v256
        %v258 = vrot.slane %v249, %v257
        %s259 = scalar_lea.vmem %s3, 1
        %v260 = vld [vmem:[%s259] ss:$2 sm:$0x3]
        %v262 = vlaneseq
        %v263 = vshrl.u32 %v262, 7
        %v264 = vsub.s32 0, %v263
        %v265 = vrot.slane %v260, %v264
        %v266 = vlaneseq
        %v267 = vshrl.u32 %v266, 7
        %v268 = vsub.s32 1, %v267
        %v269 = vrot.slane %v260, %v268
        %v270 = vld [vmem:[#allocation2] sm:$0xff]
        %v271 = vld [vmem:[#allocation2 + $0x8] sm:$0xff]
        %v272 = vld [vmem:[#allocation2 + $0x10] sm:$0xff]
        %273 = vrot.lane.b32.xlu0 %v254, 111
        %v274 = vpop.permute.xlu0 %273
        %275 = vrot.lane.b32.xlu0 %v258, 111
        %v276 = vpop.permute.xlu0 %275
        %vm277 = vcmask 908288
        %v278 = vsel %vm277, %v274, %v276
        %v282 = vmul.f32 %v270, %v274
        %v283 = vmul.f32 %v271, %v278
        %v284 = vmul.f32 %v272, %v276
        %285 = vrot.lane.b32.xlu0 %v265, 113
        %v286 = vpop.permute.xlu0 %285
        %287 = vrot.lane.b32.xlu0 %v269, 113
        %v288 = vpop.permute.xlu0 %287
        %vm289 = vcmask 924672
        %v290 = vsel %vm289, %v286, %v288
        %v294 = vmul.f32 %v270, %v286
        %v295 = vmul.f32 %v271, %v290
        %v296 = vmul.f32 %v272, %v288
        %300 = vrot.lane.b32.xlu0 %v270, 127
        %v301 = vpop.permute.xlu0 %300
        %302 = vrot.lane.b32.xlu0 %v271, 127
        %v303 = vpop.permute.xlu0 %302
        %304 = vrot.lane.b32.xlu0 %v272, 127
        %v305 = vpop.permute.xlu0 %304
        %vm306 = vcmask 1039360
        %v307 = vsel %vm306, %v301, %v303
        %v308 = vsel %vm306, %v303, %v305
        %312 = vrot.lane.b32.xlu0 %v294, 126
        %v313 = vpop.permute.xlu0 %312
        %314 = vrot.lane.b32.xlu0 %v295, 126
        %v315 = vpop.permute.xlu0 %314
        %316 = vrot.lane.b32.xlu0 %v296, 126
        %v317 = vpop.permute.xlu0 %316
        %vm318 = vcmask 1031168
        %v319 = vsel %vm318, %v313, %v315
        %v320 = vsel %vm318, %v315, %v317
        %v321 = vld [vmem:[#allocation6] sm:$0xff]
        %v322 = vld [vmem:[#allocation6 + $0x8] sm:$0xff]
        %323 = vrot.lane.b32.xlu0 %v254, 127
        %v324 = vpop.permute.xlu0 %323
        %325 = vrot.lane.b32.xlu0 %v258, 127
        %v326 = vpop.permute.xlu0 %325
        %v327 = vsel %vm306, %v324, %v326
        %v331 = vmul.f32 %v270, %v324
        %v332 = vmul.f32 %v271, %v327
        %v333 = vmul.f32 %v272, %v326
        %v334 = vld [vmem:[#allocation2 + $0x8] sm:$0xff]
        %v335 = vld [vmem:[#allocation2 + $0x10] sm:$0xff]
        %v336 = vld [vmem:[#allocation2 + $0x18] sm:$0xff]
        %337 = vrot.lane.b32.xlu0 %v265, 1
        %v338 = vpop.permute.xlu0 %337
        %339 = vrot.lane.b32.xlu0 %v269, 1
        %v340 = vpop.permute.xlu0 %339
        %vm341 = vcmask 7168
        %v342 = vsel %vm341, %v338, %v340
        %v346 = vmul.f32 %v334, %v338
        %v347 = vmul.f32 %v335, %v342
        %v348 = vmul.f32 %v336, %v340
        %352 = vrot.lane.b32.xlu0 %v346, 126
        %v353 = vpop.permute.xlu0 %352
        %354 = vrot.lane.b32.xlu0 %v347, 126
        %v355 = vpop.permute.xlu0 %354
        %356 = vrot.lane.b32.xlu0 %v348, 126
        %v357 = vpop.permute.xlu0 %356
        %v358 = vsel %vm318, %v353, %v355
        %v359 = vsel %vm318, %v355, %v357
        %s360 = scalar_lea.vmem [#allocation6], 16
        %v361 = vld [vmem:[%s360] sm:$0xff]
        %v362 = vld [vmem:[%s360 + $0x8] sm:$0xff]
        %366 = vrot.lane.b32.xlu0 %v331, 1
        %v367 = vpop.permute.xlu0 %366
        %368 = vrot.lane.b32.xlu0 %v332, 1
        %v369 = vpop.permute.xlu0 %368
        %370 = vrot.lane.b32.xlu0 %v333, 1
        %v371 = vpop.permute.xlu0 %370
        %372 = vrot.lane.b32.xlu0 %v303, 1
        %v373 = vpop.permute.xlu0 %372
        %374 = vrot.lane.b32.xlu0 %v308, 1
        %v375 = vpop.permute.xlu0 %374
        %376 = vrot.lane.b32.xlu0 %v305, 1
        %v377 = vpop.permute.xlu0 %376
        %378 = vrot.lane.b32.xlu0 %v353, 1
        %v379 = vpop.permute.xlu0 %378
        %380 = vrot.lane.b32.xlu0 %v358, 1
        %v381 = vpop.permute.xlu0 %380
        %382 = vrot.lane.b32.xlu0 %v359, 1
        %v383 = vpop.permute.xlu0 %382
        %v384 = vsel %vm341, %v367, %v369
        %v385 = vsel %vm341, %v369, %v371
        %v386 = vsel %vm341, %v373, %v375
        %v387 = vsel %vm341, %v375, %v377
        %v388 = vsel %vm341, %v379, %v381
        %v389 = vsel %vm341, %v381, %v383
        %vm396 = vcmask 195584
        %v398 = vsel %vm396, %v361, 0
        %v401 = vsel %vm396, %v362, 0
        %403 = vmatprep.subr.mxu0 %v385
        %404 = vmatpush1.msra.mxu0 %v384
        %405 = vmatprep.subr.mxu0 %v387
        %406 = vmatpush1.msra.mxu0 %v386
        %407 = vmatprep.subr.mxu0 %v389
        %408 = vmatpush1.msra.mxu0 %v388
        %409 = vmatprep.subr.mxu0 0.0
        %410 = vmatpush1.msra.mxu0 0.0
        %411 = vmatprep.subr.mxu0 0.0
        %412 = vmatpush1.msra.mxu0 0.0
        %413 = vmatprep.subr.mxu0 0.0
        %414 = vmatpush1.msra.mxu0 0.0
        %415 = vmatprep.subr.mxu0 0.0
        %416 = vmatpush1.msra.mxu0 0.0
        %417 = vmatprep.subr.mxu0 0.0
        %418 = vmatpush1.msra.mxu0 0.0
        %419 = vmatprep.subr.mxu0 0.0
        %420 = vmatpush1.msra.mxu0 0.0
        %421 = vmatprep.subr.mxu0 0.0
        %422 = vmatpush1.msra.mxu0 0.0
        %423 = vmatprep.subr.mxu0 0.0
        %424 = vmatpush1.msra.mxu0 0.0
        %425 = vmatprep.subr.mxu0 0.0
        %426 = vmatpush1.msra.mxu0 0.0
        %427 = vmatprep.subr.mxu0 0.0
        %428 = vmatpush1.msra.mxu0 0.0
        %429 = vmatprep.subr.mxu0 0.0
        %430 = vmatpush1.msra.mxu0 0.0
        %431 = vmatprep.subr.mxu0 0.0
        %432 = vmatpush1.msra.mxu0 0.0
        %433 = vmatprep.subr.mxu0 0.0
        %434 = vmatpush1.msra.mxu0 0.0
        %435 = vmatprep.subr.mxu0 0.0
        %436 = vmatpush1.msra.mxu0 0.0
        %437 = vmatprep.subr.mxu0 0.0
        %438 = vmatpush1.msra.mxu0 0.0
        %439 = vmatprep.subr.mxu0 0.0
        %440 = vmatpush1.msra.mxu0 0.0
        %441 = vmatprep.subr.mxu0 0.0
        %442 = vmatpush1.msra.mxu0 0.0
        %443 = vmatprep.subr.mxu0 0.0
        %444 = vmatpush1.msra.mxu0 0.0
        %445 = vmatprep.subr.mxu0 0.0
        %446 = vmatpush1.msra.mxu0 0.0
        %447 = vmatprep.subr.mxu0 0.0
        %448 = vmatpush1.msra.mxu0 0.0
        %449 = vmatprep.subr.mxu0 0.0
        %450 = vmatpush1.msra.mxu0 0.0
        %451 = vmatprep.subr.mxu0 0.0
        %452 = vmatpush1.msra.mxu0 0.0
        %453 = vmatprep.subr.mxu0 0.0
        %454 = vmatpush1.msra.mxu0 0.0
        %455 = vmatprep.subr.mxu0 0.0
        %456 = vmatpush1.msra.mxu0 0.0
        %457 = vmatprep.subr.mxu0 0.0
        %458 = vmatpush1.msra.mxu0 0.0
        %459 = vmatprep.subr.mxu0 0.0
        %460 = vmatpush1.msra.mxu0 0.0
        %461 = vmatprep.subr.mxu0 0.0
        %462 = vmatpush1.msra.mxu0 0.0
        %463 = vmatprep.subr.mxu0 0.0
        %464 = vmatpush1.msra.mxu0 0.0
        %465 = vmatprep.subr.mxu0 0.0
        %466 = vmatpush1.msra.mxu0 0.0
        %467 = vmatprep.mubr.f32.mxu0 0.0
        %468 = vmatmul.mubr.f32.gmra.mrb[0].mxu0 %v398
        %v469 = vpop.f32.mrb[0].mxu0
        %v470 = vadd.f32 0.0, %v469
        %v471 = vpop.f32.mrb[0].mxu0
        %v472 = vadd.f32 0.0, %v471
        %473 = vmatprep.mubr.f32.mxu0 0.0
        %474 = vmatmul.mubr.f32.gmra.mrb[0].mxu0 %v401
        %v475 = vpop.f32.mrb[0].mxu0
        %v476 = vadd.f32 0.0, %v475
        %v477 = vpop.f32.mrb[0].mxu0
        %v478 = vadd.f32 0.0, %v477
        %479 = vdwg.mxu0
        %483 = vrot.lane.b32.xlu0 %v282, 17
        %v484 = vpop.permute.xlu0 %483
        %485 = vrot.lane.b32.xlu0 %v283, 17
        %v486 = vpop.permute.xlu0 %485
        %487 = vrot.lane.b32.xlu0 %v284, 17
        %v488 = vpop.permute.xlu0 %487
        %489 = vrot.lane.b32.xlu0 %v307, 17
        %v490 = vpop.permute.xlu0 %489
        %491 = vrot.lane.b32.xlu0 %v308, 17
        %v492 = vpop.permute.xlu0 %491
        %493 = vrot.lane.b32.xlu0 %v305, 17
        %v494 = vpop.permute.xlu0 %493
        %495 = vrot.lane.b32.xlu0 %v319, 17
        %v496 = vpop.permute.xlu0 %495
        %497 = vrot.lane.b32.xlu0 %v320, 17
        %v498 = vpop.permute.xlu0 %497
        %499 = vrot.lane.b32.xlu0 %v317, 17
        %v500 = vpop.permute.xlu0 %499
        %vm501 = vcmask 138240
        %v502 = vsel %vm501, %v484, %v486
        %v503 = vsel %vm501, %v486, %v488
        %v504 = vsel %vm501, %v490, %v492
        %v505 = vsel %vm501, %v492, %v494
        %v506 = vsel %vm501, %v496, %v498
        %v507 = vsel %vm501, %v498, %v500
        %v515 = vsel %vm396, %v321, 0
        %v518 = vsel %vm396, %v322, 0
        %520 = vmatprep.subr.mxu0 %v503
        %521 = vmatpush1.msra.mxu0 %v502
        %522 = vmatprep.subr.mxu0 %v505
        %523 = vmatpush1.msra.mxu0 %v504
        %524 = vmatprep.subr.mxu0 %v507
        %525 = vmatpush1.msra.mxu0 %v506
        %526 = vmatprep.subr.mxu0 0.0
        %527 = vmatpush1.msra.mxu0 0.0
        %528 = vmatprep.subr.mxu0 0.0
        %529 = vmatpush1.msra.mxu0 0.0
        %530 = vmatprep.subr.mxu0 0.0
        %531 = vmatpush1.msra.mxu0 0.0
        %532 = vmatprep.subr.mxu0 0.0
        %533 = vmatpush1.msra.mxu0 0.0
        %534 = vmatprep.subr.mxu0 0.0
        %535 = vmatpush1.msra.mxu0 0.0
        %536 = vmatprep.subr.mxu0 0.0
        %537 = vmatpush1.msra.mxu0 0.0
        %538 = vmatprep.subr.mxu0 0.0
        %539 = vmatpush1.msra.mxu0 0.0
        %540 = vmatprep.subr.mxu0 0.0
        %541 = vmatpush1.msra.mxu0 0.0
        %542 = vmatprep.subr.mxu0 0.0
        %543 = vmatpush1.msra.mxu0 0.0
        %544 = vmatprep.subr.mxu0 0.0
        %545 = vmatpush1.msra.mxu0 0.0
        %546 = vmatprep.subr.mxu0 0.0
        %547 = vmatpush1.msra.mxu0 0.0
        %548 = vmatprep.subr.mxu0 0.0
        %549 = vmatpush1.msra.mxu0 0.0
        %550 = vmatprep.subr.mxu0 0.0
        %551 = vmatpush1.msra.mxu0 0.0
        %552 = vmatprep.subr.mxu0 0.0
        %553 = vmatpush1.msra.mxu0 0.0
        %554 = vmatprep.subr.mxu0 0.0
        %555 = vmatpush1.msra.mxu0 0.0
        %556 = vmatprep.subr.mxu0 0.0
        %557 = vmatpush1.msra.mxu0 0.0
        %558 = vmatprep.subr.mxu0 0.0
        %559 = vmatpush1.msra.mxu0 0.0
        %560 = vmatprep.subr.mxu0 0.0
        %561 = vmatpush1.msra.mxu0 0.0
        %562 = vmatprep.subr.mxu0 0.0
        %563 = vmatpush1.msra.mxu0 0.0
        %564 = vmatprep.subr.mxu0 0.0
        %565 = vmatpush1.msra.mxu0 0.0
        %566 = vmatprep.subr.mxu0 0.0
        %567 = vmatpush1.msra.mxu0 0.0
        %568 = vmatprep.subr.mxu0 0.0
        %569 = vmatpush1.msra.mxu0 0.0
        %570 = vmatprep.subr.mxu0 0.0
        %571 = vmatpush1.msra.mxu0 0.0
        %572 = vmatprep.subr.mxu0 0.0
        %573 = vmatpush1.msra.mxu0 0.0
        %574 = vmatprep.subr.mxu0 0.0
        %575 = vmatpush1.msra.mxu0 0.0
        %576 = vmatprep.subr.mxu0 0.0
        %577 = vmatpush1.msra.mxu0 0.0
        %578 = vmatprep.subr.mxu0 0.0
        %579 = vmatpush1.msra.mxu0 0.0
        %580 = vmatprep.subr.mxu0 0.0
        %581 = vmatpush1.msra.mxu0 0.0
        %582 = vmatprep.subr.mxu0 0.0
        %583 = vmatpush1.msra.mxu0 0.0
        %584 = vmatprep.mubr.f32.mxu0 0.0
        %585 = vmatmul.mubr.f32.gmra.mrb[0].mxu0 %v515
        %v586 = vpop.f32.mrb[0].mxu0
        %v587 = vadd.f32 %v470, %v586
        %v588 = vpop.f32.mrb[0].mxu0
        %v589 = vadd.f32 %v472, %v588
        %590 = vmatprep.mubr.f32.mxu0 0.0
        %591 = vmatmul.mubr.f32.gmra.mrb[0].mxu0 %v518
        %v592 = vpop.f32.mrb[0].mxu0
        %v593 = vadd.f32 %v476, %v592
        %v594 = vpop.f32.mrb[0].mxu0
        %v595 = vadd.f32 %v478, %v594
        %596 = vdwg.mxu0
        %597 = vrot.lane.b32.xlu0 %v254, 15
        %v598 = vpop.permute.xlu0 %597
        %599 = vrot.lane.b32.xlu0 %v258, 15
        %v600 = vpop.permute.xlu0 %599
        %vm601 = vcmask 121856
        %v602 = vsel %vm601, %v598, %v600
        %v606 = vmul.f32 %v334, %v598
        %v607 = vmul.f32 %v335, %v602
        %v608 = vmul.f32 %v336, %v600
        %609 = vrot.lane.b32.xlu0 %v265, 17
        %v610 = vpop.permute.xlu0 %609
        %611 = vrot.lane.b32.xlu0 %v269, 17
        %v612 = vpop.permute.xlu0 %611
        %v613 = vsel %vm501, %v610, %v612
        %v617 = vmul.f32 %v334, %v610
        %v618 = vmul.f32 %v335, %v613
        %v619 = vmul.f32 %v336, %v612
        %623 = vrot.lane.b32.xlu0 %v334, 127
        %v624 = vpop.permute.xlu0 %623
        %625 = vrot.lane.b32.xlu0 %v335, 127
        %v626 = vpop.permute.xlu0 %625
        %627 = vrot.lane.b32.xlu0 %v336, 127
        %v628 = vpop.permute.xlu0 %627
        %v629 = vsel %vm306, %v624, %v626
        %v630 = vsel %vm306, %v626, %v628
        %634 = vrot.lane.b32.xlu0 %v617, 126
        %v635 = vpop.permute.xlu0 %634
        %636 = vrot.lane.b32.xlu0 %v618, 126
        %v637 = vpop.permute.xlu0 %636
        %638 = vrot.lane.b32.xlu0 %v619, 126
        %v639 = vpop.permute.xlu0 %638
        %v640 = vsel %vm318, %v635, %v637
        %v641 = vsel %vm318, %v637, %v639
        %s642 = scalar_lea.vmem [#allocation6], 32
        %v643 = vld [vmem:[%s642] sm:$0xff]
        %v644 = vld [vmem:[%s642 + $0x8] sm:$0xff]
        %648 = vrot.lane.b32.xlu0 %v606, 113
        %v649 = vpop.permute.xlu0 %648
        %650 = vrot.lane.b32.xlu0 %v607, 113
        %v651 = vpop.permute.xlu0 %650
        %652 = vrot.lane.b32.xlu0 %v608, 113
        %v653 = vpop.permute.xlu0 %652
        %654 = vrot.lane.b32.xlu0 %v629, 113
        %v655 = vpop.permute.xlu0 %654
        %656 = vrot.lane.b32.xlu0 %v630, 113
        %v657 = vpop.permute.xlu0 %656
        %658 = vrot.lane.b32.xlu0 %v628, 113
        %v659 = vpop.permute.xlu0 %658
        %660 = vrot.lane.b32.xlu0 %v640, 113
        %v661 = vpop.permute.xlu0 %660
        %662 = vrot.lane.b32.xlu0 %v641, 113
        %v663 = vpop.permute.xlu0 %662
        %664 = vrot.lane.b32.xlu0 %v639, 113
        %v665 = vpop.permute.xlu0 %664
        %v666 = vsel %vm289, %v649, %v651
        %v667 = vsel %vm289, %v651, %v653
        %v668 = vsel %vm289, %v655, %v657
        %v669 = vsel %vm289, %v657, %v659
        %v670 = vsel %vm289, %v661, %v663
        %v671 = vsel %vm289, %v663, %v665
        %v679 = vsel %vm396, %v643, 0
        %v682 = vsel %vm396, %v644, 0
        %684 = vmatprep.subr.mxu0 %v667
        %685 = vmatpush1.msra.mxu0 %v666
        %686 = vmatprep.subr.mxu0 %v669
        %687 = vmatpush1.msra.mxu0 %v668
        %688 = vmatprep.subr.mxu0 %v671
        %689 = vmatpush1.msra.mxu0 %v670
        %690 = vmatprep.subr.mxu0 0.0
        %691 = vmatpush1.msra.mxu0 0.0
        %692 = vmatprep.subr.mxu0 0.0
        %693 = vmatpush1.msra.mxu0 0.0
        %694 = vmatprep.subr.mxu0 0.0
        %695 = vmatpush1.msra.mxu0 0.0
        %696 = vmatprep.subr.mxu0 0.0
        %697 = vmatpush1.msra.mxu0 0.0
        %698 = vmatprep.subr.mxu0 0.0
        %699 = vmatpush1.msra.mxu0 0.0
        %700 = vmatprep.subr.mxu0 0.0
        %701 = vmatpush1.msra.mxu0 0.0
        %702 = vmatprep.subr.mxu0 0.0
        %703 = vmatpush1.msra.mxu0 0.0
        %704 = vmatprep.subr.mxu0 0.0
        %705 = vmatpush1.msra.mxu0 0.0
        %706 = vmatprep.subr.mxu0 0.0
        %707 = vmatpush1.msra.mxu0 0.0
        %708 = vmatprep.subr.mxu0 0.0
        %709 = vmatpush1.msra.mxu0 0.0
        %710 = vmatprep.subr.mxu0 0.0
        %711 = vmatpush1.msra.mxu0 0.0
        %712 = vmatprep.subr.mxu0 0.0
        %713 = vmatpush1.msra.mxu0 0.0
        %714 = vmatprep.subr.mxu0 0.0
        %715 = vmatpush1.msra.mxu0 0.0
        %716 = vmatprep.subr.mxu0 0.0
        %717 = vmatpush1.msra.mxu0 0.0
        %718 = vmatprep.subr.mxu0 0.0
        %719 = vmatpush1.msra.mxu0 0.0
        %720 = vmatprep.subr.mxu0 0.0
        %721 = vmatpush1.msra.mxu0 0.0
        %722 = vmatprep.subr.mxu0 0.0
        %723 = vmatpush1.msra.mxu0 0.0
        %724 = vmatprep.subr.mxu0 0.0
        %725 = vmatpush1.msra.mxu0 0.0
        %726 = vmatprep.subr.mxu0 0.0
        %727 = vmatpush1.msra.mxu0 0.0
        %728 = vmatprep.subr.mxu0 0.0
        %729 = vmatpush1.msra.mxu0 0.0
        %730 = vmatprep.subr.mxu0 0.0
        %731 = vmatpush1.msra.mxu0 0.0
        %732 = vmatprep.subr.mxu0 0.0
        %733 = vmatpush1.msra.mxu0 0.0
        %734 = vmatprep.subr.mxu0 0.0
        %735 = vmatpush1.msra.mxu0 0.0
        %736 = vmatprep.subr.mxu0 0.0
        %737 = vmatpush1.msra.mxu0 0.0
        %738 = vmatprep.subr.mxu0 0.0
        %739 = vmatpush1.msra.mxu0 0.0
        %740 = vmatprep.subr.mxu0 0.0
        %741 = vmatpush1.msra.mxu0 0.0
        %742 = vmatprep.subr.mxu0 0.0
        %743 = vmatpush1.msra.mxu0 0.0
        %744 = vmatprep.subr.mxu0 0.0
        %745 = vmatpush1.msra.mxu0 0.0
        %746 = vmatprep.subr.mxu0 0.0
        %747 = vmatpush1.msra.mxu0 0.0
        %748 = vmatprep.mubr.f32.mxu0 0.0
        %749 = vmatmul.mubr.f32.gmra.mrb[0].mxu0 %v679
        %v750 = vpop.f32.mrb[0].mxu0
        %v751 = vadd.f32 0.0, %v750
        %v752 = vpop.f32.mrb[0].mxu0
        %v753 = vadd.f32 0.0, %v752
        %754 = vmatprep.mubr.f32.mxu0 0.0
        %755 = vmatmul.mubr.f32.gmra.mrb[0].mxu0 %v682
        %v756 = vpop.f32.mrb[0].mxu0
        %v757 = vadd.f32 0.0, %v756
        %v758 = vpop.f32.mrb[0].mxu0
        %v759 = vadd.f32 0.0, %v758
        %760 = vdwg.mxu0
        %v761 = vadd.f32 %v587, %v751
        %v762 = vadd.f32 %v589, %v753
        %v763 = vadd.f32 %v593, %v757
        %v764 = vadd.f32 %v595, %v759
        %v765 = vmax.f32 %v761, 0.0
        %v766 = vmax.f32 %v762, 0.0
        %v767 = vmax.f32 %v763, 0.0
        %v768 = vmax.f32 %v764, 0.0
        %v769 = vld [vmem:[#allocation8] sm:$0xff]
        %vm770 = vcmask 130048
        %v772 = vsel %vm770, %v769, 0
        %774 = vmatprep.subr.mxu0 %v766
        %775 = vmatpush1.msra.mxu0 %v765
        %776 = vmatprep.subr.mxu0 %v768
        %777 = vmatpush1.msra.mxu0 %v767
        %778 = vmatprep.subr.mxu0 0.0
        %779 = vmatpush1.msra.mxu0 0.0
        %780 = vmatprep.subr.mxu0 0.0
        %781 = vmatpush1.msra.mxu0 0.0
        %782 = vmatprep.subr.mxu0 0.0
        %783 = vmatpush1.msra.mxu0 0.0
        %784 = vmatprep.subr.mxu0 0.0
        %785 = vmatpush1.msra.mxu0 0.0
        %786 = vmatprep.subr.mxu0 0.0
        %787 = vmatpush1.msra.mxu0 0.0
        %788 = vmatprep.subr.mxu0 0.0
        %789 = vmatpush1.msra.mxu0 0.0
        %790 = vmatprep.subr.mxu0 0.0
        %791 = vmatpush1.msra.mxu0 0.0
        %792 = vmatprep.subr.mxu0 0.0
        %793 = vmatpush1.msra.mxu0 0.0
        %794 = vmatprep.subr.mxu0 0.0
        %795 = vmatpush1.msra.mxu0 0.0
        %796 = vmatprep.subr.mxu0 0.0
        %797 = vmatpush1.msra.mxu0 0.0
        %798 = vmatprep.subr.mxu0 0.0
        %799 = vmatpush1.msra.mxu0 0.0
        %800 = vmatprep.subr.mxu0 0.0
        %801 = vmatpush1.msra.mxu0 0.0
        %802 = vmatprep.subr.mxu0 0.0
        %803 = vmatpush1.msra.mxu0 0.0
        %804 = vmatprep.subr.mxu0 0.0
        %805 = vmatpush1.msra.mxu0 0.0
        %806 = vmatprep.subr.mxu0 0.0
        %807 = vmatpush1.msra.mxu0 0.0
        %808 = vmatprep.subr.mxu0 0.0
        %809 = vmatpush1.msra.mxu0 0.0
        %810 = vmatprep.subr.mxu0 0.0
        %811 = vmatpush1.msra.mxu0 0.0
        %812 = vmatprep.subr.mxu0 0.0
        %813 = vmatpush1.msra.mxu0 0.0
        %814 = vmatprep.subr.mxu0 0.0
        %815 = vmatpush1.msra.mxu0 0.0
        %816 = vmatprep.subr.mxu0 0.0
        %817 = vmatpush1.msra.mxu0 0.0
        %818 = vmatprep.subr.mxu0 0.0
        %819 = vmatpush1.msra.mxu0 0.0
        %820 = vmatprep.subr.mxu0 0.0
        %821 = vmatpush1.msra.mxu0 0.0
        %822 = vmatprep.subr.mxu0 0.0
        %823 = vmatpush1.msra.mxu0 0.0
        %824 = vmatprep.subr.mxu0 0.0
        %825 = vmatpush1.msra.mxu0 0.0
        %826 = vmatprep.subr.mxu0 0.0
        %827 = vmatpush1.msra.mxu0 0.0
        %828 = vmatprep.subr.mxu0 0.0
        %829 = vmatpush1.msra.mxu0 0.0
        %830 = vmatprep.subr.mxu0 0.0
        %831 = vmatpush1.msra.mxu0 0.0
        %832 = vmatprep.subr.mxu0 0.0
        %833 = vmatpush1.msra.mxu0 0.0
        %834 = vmatprep.subr.mxu0 0.0
        %835 = vmatpush1.msra.mxu0 0.0
        %836 = vmatprep.subr.mxu0 0.0
        %837 = vmatpush1.msra.mxu0 0.0
        %838 = vmatprep.mubr.f32.mxu0 0.0
        %839 = vmatmul.mubr.f32.gmra.mrb[0].mxu0 %v772
        %v840 = vpop.f32.mrb[0].mxu0
        %v841 = vadd.f32 0.0, %v840
        %v842 = vpop.f32.mrb[0].mxu0
        %v843 = vadd.f32 0.0, %v842
        %844 = vdwg.mxu0
        %v845 = vld [vmem:[%s208] sm:$0xff]
        %v846 = vld [vmem:[%s208 + $0x8] sm:$0xff]
        %v847 = vadd.f32 %v845, %v841
        %v848 = vadd.f32 %v846, %v843
        %849 = vst [vmem:[%s240] sm:$0xff] %v847
        %850 = vst [vmem:[%s240 + $0x8] sm:$0xff] %v848
        %s851 = sand.u32 %s119, 1
        %s852 = scalar_lea.sflag [#allocation5], %s851
        %s853 = sand.u32 %s119, 1
        %s854 = smul.addr %s853, 16
        %s855 = scalar_lea.vmem [#allocation9], %s854
        // Predicated region
        $region49: #{tpu_custom_call.1} parent=35 // pred_check
          %p856 = pneg %p129
        $region50: #{tpu_custom_call.1} parent=35 // pred_check_branch
          %858 = sbr.rel (%p856) target = $region52
        $region51: #{tpu_custom_call.1} parent=35 // pred_region
          %s860 = ssub.s32 256, 256
          %861 = vsyncadd %s852, %s860
          %s862 = smul.addr %s22, 2
          %s863 = smul.addr %s862, 128
          %s864 = scalar_lea.hbm %s4, %s863
          %s866 = sshll.u32 %s855, 4
          %s867 = int_to_ptr.vmem [resolvable:$true] %s866
          %869 = dma.vmem_to_hbm [thread:$0]  %s867, 256, %s864, %s852
        $region52: #{tpu_custom_call.1} parent=35 // pred_fallthru
          _
      $region36: #{tpu_custom_call.1} parent=5 // pred_fallthru
        _
      %p870 = scmp.le.s32.totalorder 2, %s17
      // Predicated region
      $region53: #{tpu_custom_call.1} parent=5 // pred_check
        %p871 = pneg %p870
      $region54: #{tpu_custom_call.1} parent=5 // pred_check_branch
        %873 = sbr.rel (%p871) target = $region56
      $region55: #{tpu_custom_call.1} parent=5 // pred_region
        %s874 = ssub.s32 %s17, 2
        // Predicated region
        $region57: #{tpu_custom_call.1} parent=55 // pred_check
          %p875 = pneg %p135
        $region58: #{tpu_custom_call.1} parent=55 // pred_check_branch
          %877 = sbr.rel (%p875) target = $region60
        $region59: #{tpu_custom_call.1} parent=55 // pred_region
          %s878 = sand.u32 %s120, 1
          %s879 = scalar_lea.sflag [#allocation5], %s878
          %s880 = sand.u32 %s120, 1
          %s881 = smul.addr %s880, 16
          %s882 = scalar_lea.vmem [#allocation9], %s881
          %883 = dma.done %s879, 256
        $region60: #{tpu_custom_call.1} parent=55 // pred_fallthru
          _
      $region56: #{tpu_custom_call.1} parent=5 // pred_fallthru
        _
    $region6: #{tpu_custom_call.1} parent=1 // loop_footer
      %s21 = sadd.s32 1, %s17
    $region7: #{tpu_custom_call.1} parent=1 // loop_footer_branch
      %16 = sbr.rel target = $region3
    $region8: #{tpu_custom_call.1} parent=1 // loop_exit
      _
    %884 = vsyncpa [#allocation4], 1
    %s885 = scalar_lea.sflag [#allocation4], 1
    %886 = vsyncpa %s885, 1
    %887 = vsyncpa [#allocation7], 1
    %888 = vsyncpa [#allocation5], 1
    %s889 = scalar_lea.sflag [#allocation5], 1
    %890 = vsyncpa %s889, 1

</llo_original>
